<compile_context>
chip_gen: v7x
topology: tpu7x:2x2x1
jax: 0.10.0
libtpu: 0.0.40
codegen_flags: <defaults>
</compile_context>

<pallas_src>
import functools

import numpy as np
import jax
import jax.numpy as jnp
from jax import lax
from jax.experimental import pallas as pl
from jax.experimental.pallas import tpu as pltpu


def _bilinear_weights(in_size: int, out_size: int) -> jnp.ndarray:
    """(out_size, in_size) bilinear interpolation matrix matching
    torch.nn.functional.interpolate(mode='bilinear', align_corners=False)."""
    scale = in_size / out_size
    dst = jnp.arange(out_size, dtype=jnp.float32)
    src = jnp.maximum((dst + 0.5) * scale - 0.5, 0.0)  # torch clamps src >= 0
    i0 = jnp.clip(jnp.floor(src).astype(jnp.int32), 0, in_size - 1)
    i1 = jnp.clip(i0 + 1, 0, in_size - 1)
    frac = jnp.clip(src - i0.astype(jnp.float32), 0.0, 1.0)
    w0 = (1.0 - frac)[:, None] * jax.nn.one_hot(i0, in_size, dtype=jnp.float32)
    w1 = frac[:, None] * jax.nn.one_hot(i1, in_size, dtype=jnp.float32)
    return w0 + w1


def _get_target_size(height, width, min_size, max_size):
    im_size_min = min(height, width)
    im_size_max = max(height, width)
    scale = min_size / im_size_min
    if scale * im_size_max > max_size:
        scale = max_size / im_size_max
    # mmdet uses int(round(...)) — matched exactly.
    return int(round(height * scale)), int(round(width * scale)), scale


def _resize_pad_kernel(x_ref, wh_ref, wwt_ref, o_ref, *,
                       h_out, w_out, pad_value, compute_dtype, h_first):
    # x_ref:   (C_BLK, H_in, W_in)   batch of image planes
    # wh_ref:  (h_pad, H_in)         pre-padded row-resize weights (compute dtype)
    # wwt_ref: (W_in, TW)            pre-padded col-resize weights, W-tiled
    # o_ref:   (C_BLK, h_pad, TW)    padded output planes
    c_blk = x_ref.shape[0]
    h_pad, tw = o_ref.shape[1], o_ref.shape[2]

    # Pad band generated in-kernel (cheap VPU work; kernel is MXU/DMA bound).
    j = pl.program_id(1)
    row = lax.broadcasted_iota(jnp.int32, (h_pad, tw), 0)
    col = lax.broadcasted_iota(jnp.int32, (h_pad, tw), 1) + j * tw
    pad_band = (row >= h_out) | (col >= w_out)
    pad_c = jnp.float32(pad_value)

    wh = wh_ref[...]      # hoisted once per grid step
    wwt = wwt_ref[...]
    is_int_out = jnp.issubdtype(o_ref.dtype, jnp.integer)

    def plane(ci, carry):
        x_c = x_ref[ci].astype(compute_dtype)                       # (H_in, W_in)
        if h_first:
            tmp = jnp.dot(wh, x_c, preferred_element_type=jnp.float32)
            res = jnp.dot(tmp.astype(compute_dtype), wwt,
                          preferred_element_type=jnp.float32)
        else:
            tmp = jnp.dot(x_c, wwt, preferred_element_type=jnp.float32)
            res = jnp.dot(wh, tmp.astype(compute_dtype),
                          preferred_element_type=jnp.float32)
        res = jnp.where(pad_band, pad_c, res)
        if is_int_out:
            res = jnp.round(res)
        o_ref[ci] = res.astype(o_ref.dtype)
        return carry

    if c_blk == 1:
        plane(0, 0)
    else:
        # fori_loop (not a static Python loop) bounds the live range of the
        # per-plane intermediates to a single plane.
        lax.fori_loop(0, c_blk, plane, 0)


def batch_resize(inputs, *, scale, pad_size_divisor=1, pad_value=0.0,
                 compute_dtype=jnp.bfloat16, _max_tw=None):
    """Pallas implementation of BatchResize.forward for the image tensor.

    Returns (padded_resized_inputs, scale_factor)."""
    n, c, h, w = inputs.shape
    min_size, max_size = min(scale), max(scale)
    h_out, w_out, s = _get_target_size(h, w, min_size, max_size)
    d = int(pad_size_divisor)
    h_pad = -(-h_out // d) * d
    w_pad = -(-w_out // d) * d
    nc = n * c

    in_itemsize = np.dtype(inputs.dtype).itemsize
    cd_itemsize = np.dtype(compute_dtype).itemsize

    # Per-generation VMEM budget (v7x: 64 MiB physical, v5e/v6e: 128 MiB).
    try:
        vmem_cap = int(getattr(pltpu.get_tpu_info(), "vmem_capacity_bytes",
                               64 * 1024 * 1024))
    except Exception:  # pragma: no cover - conservative fallback
        vmem_cap = 64 * 1024 * 1024
    vmem_cap = max(vmem_cap, 32 * 1024 * 1024)
    budget = int(vmem_cap * 0.7)

    def working_set(c_blk, tw):
        x_blk = 2 * c_blk * h * w * in_itemsize          # double-buffered input block
        o_blk = 2 * c_blk * h_pad * tw * in_itemsize     # double-buffered output block
        wts = 2 * (h_pad * h + w * tw) * cd_itemsize     # weight matrices (dbl-buffered)
        inter_rows = max(h * tw, h_pad * w) if tw >= w_pad else h * tw
        live = (h * w * cd_itemsize                      # one plane in compute dtype
                + inter_rows * (4 + cd_itemsize)         # first-pass result + recast
                + h_pad * tw * (4 + in_itemsize))        # second-pass result + store cast
        return x_blk + o_blk + wts + live + (2 << 20)    # slack for Mosaic scratch

    # ---- W (lane) tile: full width when it fits, else the multiple of 128 that
    # minimizes (#tiles, padded width) so w_k == w_pad whenever possible.
    if w_pad <= (_max_tw or w_pad) and working_set(1, w_pad) <= budget:
        tw = w_pad
    else:
        cap = min(_max_tw or w_pad, w_pad)
        best = None
        for t in range(128, max(cap, 128) + 1, 128):
            if t >= w_pad or working_set(1, t) > budget:
                continue
            wk = -(-w_pad // t) * t
            key = (wk // t, wk)          # fewest grid steps, then least waste
            if best is None or key < best[0]:
                best = (key, t)
        tw = best[1] if best is not None else 128
    w_k = -(-w_pad // tw) * tw
    n_wt = w_k // tw

    # ---- planes per grid step: biggest divisor of N*C that fits the budget,
    # keeping >= 2 total grid steps so both v7x TensorCores get work.
    c_blk = 1
    for cb in range(min(8, nc), 0, -1):
        if nc % cb:
            continue
        if (nc // cb) * n_wt < 2 and nc * n_wt >= 2:
            continue
        if working_set(cb, tw) <= budget:
            c_blk = cb
            break
    n_pb = nc // c_blk

    # ---- pass order: pick the cheaper matmul order (H-first only if W untiled).
    cost_w_first = h * w_k * (w + h_pad)
    cost_h_first = h_pad * w * (h + w_k)
    h_first = (n_wt == 1) and (cost_h_first < cost_w_first)

    # Pre-padded bilinear weight matrices in the compute dtype.
    wh = _bilinear_weights(h, h_out)                      # (h_out, H_in)
    ww = _bilinear_weights(w, w_out)                      # (w_out, W_in)
    wh_p = (jnp.zeros((h_pad, h), jnp.float32).at[:h_out].set(wh)
            .astype(compute_dtype))
    wwt_p = (jnp.zeros((w, w_k), jnp.float32).at[:, :w_out].set(ww.T)
             .astype(compute_dtype))

    need = working_set(c_blk, tw)
    vmem_limit = int(min(max(need + need // 4, 32 * 1024 * 1024),
                         (vmem_cap * 3) // 4))

    kernel = functools.partial(
        _resize_pad_kernel, h_out=h_out, w_out=w_out,
        pad_value=float(pad_value), compute_dtype=compute_dtype,
        h_first=h_first)

    x_flat = inputs.reshape(nc, h, w)

    out_flat = pl.pallas_call(
        kernel,
        out_shape=jax.ShapeDtypeStruct((nc, h_pad, w_k), inputs.dtype),
        grid_spec=pltpu.PrefetchScalarGridSpec(
            num_scalar_prefetch=0,
            grid=(n_pb, n_wt),
            in_specs=[
                # x: constant along j -> fetched once per plane block
                pl.BlockSpec((c_blk, h, w), lambda p, j: (p, 0, 0)),
                pl.BlockSpec((h_pad, h), lambda p, j: (0, 0)),   # Wh (grid-invariant)
                pl.BlockSpec((w, tw), lambda p, j: (0, j)),      # Wwt (W-tiled)
            ],
            out_specs=pl.BlockSpec((c_blk, h_pad, tw), lambda p, j: (p, 0, j)),
        ),
        compiler_params=pltpu.CompilerParams(
            dimension_semantics=("parallel", "parallel"),
            vmem_limit_bytes=vmem_limit),
    )(x_flat, wh_p, wwt_p)

    if w_k != w_pad:
        out_flat = out_flat[:, :, :w_pad]
    return out_flat.reshape(n, c, h_pad, w_pad), s


if __name__ == "__main__":
    key = jax.random.PRNGKey(0)

    def reference(x, scale_cfg, divisor, pv):
        n, c, h, w = x.shape
        h_out, w_out, s_ref = _get_target_size(h, w, min(scale_cfg), max(scale_cfg))
        h_pad = -(-h_out // divisor) * divisor
        w_pad = -(-w_out // divisor) * divisor
        wh = _bilinear_weights(h, h_out)
        ww = _bilinear_weights(w, w_out)
        resized = jnp.einsum('oh,nchw,pw->ncop', wh, x, ww,
                             precision=lax.Precision.HIGHEST)
        ref = jnp.full((n, c, h_pad, w_pad), pv, x.dtype)
        return ref.at[:, :, :h_out, :w_out].set(resized), s_ref, h_out, w_out

    # (shape, scale, pad_size_divisor, pad_value, _max_tw)
    cases = [
        ((2, 4, 16, 16), (24, 32), 32, 0.5, None),     # upscale + pad band, W-first
        ((1, 3, 16, 32), (8, 16), 8, 0.0, None),       # downscale, H-pass-first path
        ((1, 2, 64, 200), (128, 256), 64, 0.25, 128),  # W-tiled grid (n_wt = 2)
    ]
    for i, (shape, scale_cfg, div, pv, max_tw) in enumerate(cases):
        kk = jax.random.fold_in(key, i)
        x = jax.random.uniform(kk, shape, dtype=jnp.float32)
        out, s = batch_resize(x, scale=scale_cfg, pad_size_divisor=div,
                              pad_value=pv, _max_tw=max_tw)
        out = jax.block_until_ready(out)

        ref, s_ref, h_out, w_out = reference(x, scale_cfg, div, pv)
        assert out.shape == ref.shape, (i, out.shape, ref.shape)
        assert abs(s - s_ref) < 1e-12, (i, s, s_ref)
        # bf16 MXU compute -> ~1% of the [0,1] data range vs f32 reference.
        max_err = float(jnp.max(jnp.abs(out - ref)))
        assert max_err < 3e-2, (i, max_err)
        # Pad band must be exactly pad_value.
        assert bool(jnp.all(out[:, :, h_out:, :] == pv)), i
        assert bool(jnp.all(out[:, :, :, w_out:] == pv)), i

    print("KERNEL_OK")
</pallas_src>

<mosaic_0001>
module attributes {stable_mosaic.version = 11 : i64} {
  func.func @_resize_pad_kernel(%arg0: i32, %arg1: i32, %arg2: memref<4x16x16xf32, #tpu.memory_space<vmem>>, %arg3: memref<32x16xbf16, #tpu.memory_space<vmem>>, %arg4: memref<16x32xbf16, #tpu.memory_space<vmem>>, %arg5: memref<4x32x32xf32, #tpu.memory_space<vmem>>) attributes {dimension_semantics = [#tpu.dimension_semantics<parallel>, #tpu.dimension_semantics<parallel>], iteration_bounds = array<i64: 2, 1>, scalar_prefetch = 0 : i64, scratch_operands = 0 : i64, tpu.core_type = #tpu.core_type<tc>, window_params = [{transform_indices = @transform_0, window_bounds = array<i64: 4, 16, 16>}, {pipeline_mode = #tpu.pipeline_mode<synchronous>, transform_indices = @transform_1, window_bounds = array<i64: 32, 16>}, {transform_indices = @transform_2, window_bounds = array<i64: 16, 32>}, {transform_indices = @transform_3, window_bounds = array<i64: 4, 32, 32>}]} {
    %0 = tpu.iota {dimensions = array<i32: 0>} : vector<32x32xi32>
    %1 = tpu.iota {dimensions = array<i32: 1>} : vector<32x32xi32>
    %c32_i32 = arith.constant 32 : i32
    %2 = arith.muli %arg1, %c32_i32 : i32
    %3 = vector.broadcast %2 : i32 to vector<32x32xi32>
    %4 = arith.addi %1, %3 : vector<32x32xi32>
    %c24_i32 = arith.constant 24 : i32
    %5 = vector.broadcast %c24_i32 : i32 to vector<32x32xi32>
    %6 = arith.cmpi sge, %0, %5 : vector<32x32xi32>
    %c24_i32_0 = arith.constant 24 : i32
    %7 = vector.broadcast %c24_i32_0 : i32 to vector<32x32xi32>
    %8 = arith.cmpi sge, %4, %7 : vector<32x32xi32>
    %9 = arith.ori %6, %8 : vector<32x32xi1>
    %c0 = arith.constant 0 : index
    %c0_1 = arith.constant 0 : index
    %10 = vector.load %arg3[%c0, %c0_1] : memref<32x16xbf16, #tpu.memory_space<vmem>>, vector<32x16xbf16>
    %c0_2 = arith.constant 0 : index
    %c0_3 = arith.constant 0 : index
    %11 = vector.load %arg4[%c0_2, %c0_3] : memref<16x32xbf16, #tpu.memory_space<vmem>>, vector<16x32xbf16>
    %cst = arith.constant 5.000000e-01 : f32
    %c0_i32 = arith.constant 0 : i32
    %c4_i32 = arith.constant 4 : i32
    %12 = arith.addi %c0_i32, %c4_i32 : i32
    %c1_i32 = arith.constant 1 : i32
    scf.for %arg6 = %c0_i32 to %12 step %c1_i32  : i32 {
      %13 = arith.index_cast %arg6 : i32 to index
      %c0_5 = arith.constant 0 : index
      %c0_6 = arith.constant 0 : index
      %14 = vector.load %arg2[%13, %c0_5, %c0_6] : memref<4x16x16xf32, #tpu.memory_space<vmem>>, vector<1x16x16xf32>
      %15 = vector.shape_cast %14 : vector<1x16x16xf32> to vector<16x16xf32>
      %16 = arith.truncf %15 : vector<16x16xf32> to vector<16x16xbf16>
      %cst_7 = arith.constant dense<0.000000e+00> : vector<16x32xf32>
      %17 = tpu.matmul %16, %11, %cst_7 {dimension_numbers = #tpu.dot_dimension_numbers<[1], [0], [0], [1], [0, 0, 1, 1], [], []>} : vector<16x16xbf16>, vector<16x32xbf16>, vector<16x32xf32> -> vector<16x32xf32>
      %18 = arith.truncf %17 : vector<16x32xf32> to vector<16x32xbf16>
      %cst_8 = arith.constant dense<0.000000e+00> : vector<32x32xf32>
      %19 = tpu.matmul %10, %18, %cst_8 {dimension_numbers = #tpu.dot_dimension_numbers<[1], [0], [0], [1], [0, 0, 1, 1], [], []>} : vector<32x16xbf16>, vector<16x32xbf16>, vector<32x32xf32> -> vector<32x32xf32>
      %20 = vector.broadcast %cst : f32 to vector<32x32xf32>
      %21 = arith.select %9, %20, %19 : vector<32x32xi1>, vector<32x32xf32>
      %22 = arith.index_cast %arg6 : i32 to index
      %c0_9 = arith.constant 0 : index
      %c0_10 = arith.constant 0 : index
      %23 = vector.load %arg5[%22, %c0_9, %c0_10] : memref<4x32x32xf32, #tpu.memory_space<vmem>>, vector<1x32x32xf32>
      %24 = vector.shape_cast %23 : vector<1x32x32xf32> to vector<32x32xf32>
      %25 = vector.shape_cast %21 : vector<32x32xf32> to vector<1x32x32xf32>
      tpu.vector_store %arg5[%22, %c0_9, %c0_10], %25 {strides = array<i32>} : memref<4x32x32xf32, #tpu.memory_space<vmem>>, vector<1x32x32xf32>,
    }
    %c4_i32_4 = arith.constant 4 : i32
    return
  }
  func.func @transform_0(%arg0: i32, %arg1: i32) -> (i32, i32, i32) {
    %c0_i32 = arith.constant 0 : i32
    %c0_i32_0 = arith.constant 0 : i32
    %c0_i32_1 = arith.constant 0 : i32
    return %arg0, %c0_i32, %c0_i32_0 : i32, i32, i32
  }
  func.func @transform_1(%arg0: i32, %arg1: i32) -> (i32, i32) {
    %c0_i32 = arith.constant 0 : i32
    %c0_i32_0 = arith.constant 0 : i32
    %c0_i32_1 = arith.constant 0 : i32
    return %c0_i32, %c0_i32_0 : i32, i32
  }
  func.func @transform_2(%arg0: i32, %arg1: i32) -> (i32, i32) {
    %c0_i32 = arith.constant 0 : i32
    %c0_i32_0 = arith.constant 0 : i32
    return %c0_i32, %arg1 : i32, i32
  }
  func.func @transform_3(%arg0: i32, %arg1: i32) -> (i32, i32, i32) {
    %c0_i32 = arith.constant 0 : i32
    %c0_i32_0 = arith.constant 0 : i32
    return %arg0, %c0_i32, %arg1 : i32, i32, i32
  }
}

</mosaic_0001>

<llo_original>
// kernel: tpu_custom_call.1
$region0: #{tpu_custom_call.1}
  #allocation0 [shape = 'u32[]', space=smem, size = 0x4, offset = 0x4, fixed_abs, tag = 'smem constant byte address 0x4 - core index']
  #allocation1 [shape = 'u32[144,128]{1,0:T(1,128)}', space=vmem, size = 0x12000, scoped, tag = 'internal scratch']
  %s0 = inlined_call_operand.hbm [shape: f32[8,16,16], index: 0, kind: input, shape index: {}]
  %s1 = inlined_call_operand.vmem [shape: bf16[32,16], index: 1, kind: input, shape index: {}]
  %s2 = inlined_call_operand.vmem [shape: bf16[16,32], index: 2, kind: input, shape index: {}]
  %s3 = inlined_call_operand.hbm [shape: f32[8,32,32], index: 3, kind: output, shape index: {}]
  %s4 = sld [smem:[#allocation0]]
  $region56: #{tpu_custom_call.1} parent=0
    _
  %s6 = ssub.s32 1, %s4
  %s7 = scalar_select 0, %s6, %s4
  $region1: #{tpu_custom_call.1} parent=0
    #allocation2 [shape = 'u8[65536]{0}', space=vmem, size = 0x10000, scoped, tag = 'input window, operand 0']
    #allocation3 [shape = 's32[2]{0}', space=sflag, size = 0x8, scoped, tag = 'scoped memory for tpu_custom_call.1']
    #allocation4 [shape = 's32[2]{0}', space=sflag, size = 0x8, scoped, tag = 'scoped memory for tpu_custom_call.1']
    #allocation5 [shape = 'u8[131072]{0}', space=vmem, size = 0x20000, scoped, tag = 'output window, operand 0']
    %8 = vsyncpa [#allocation3], 0
    %s9 = scalar_lea.sflag [#allocation3], 1
    %10 = vsyncpa %s9, 0
    %11 = vsyncpa [#allocation4], 0
    %s12 = scalar_lea.sflag [#allocation4], 1
    %13 = vsyncpa %s12, 0
    loop: start=0, step=1, limit=4
    $region2: #{tpu_custom_call.1} parent=1 // loop_pre_header
      _
    $region3: #{tpu_custom_call.1} parent=1 // loop_header
      %s15 = sphi 0, %s19
      %p16 = scmp.ge.s32.totalorder %s15, 4
      %s22 = sphi 0, %s34
      %s23 = sphi 0, %s30
      %s24 = sphi 0, %s22
      %s25 = sphi 0, %s23
      %s26 = sphi 0, %s24
      %s27 = sphi 0, %s25
      %s37 = sphi 0, %s39
      %s40 = sphi 0, %s37
      %s41 = sphi 0, %s40
      %s57 = sphi 0, %s41
      %s61 = sphi 0, %s61
      %s63 = sphi 0, %s61
      %s64 = sphi 0, %s63
      %s78 = sphi 0, %s64
      %s84 = sphi 0, %s86
      %s87 = sphi 0, %s84
      %s88 = sphi 0, %s87
      %s104 = sphi 0, %s88
      %s112 = sphi 0, %s114
      %s115 = sphi 0, %s112
      %s116 = sphi 0, %s115
      %s132 = sphi 0, %s116
    $region4: #{tpu_custom_call.1} parent=1 // loop_header_branch
      %18 = sbr.rel (%p16) target = $region8
    $region5: #{tpu_custom_call.1} parent=1 // loop_body
      %s20 = ssub.s32 %s15, 1
      %s21 = ssub.s32 %s15, 2
      %s28 = sadd.s32 1, %s23
      %p29 = scmp.ge.s32.totalorder %s28, 1
      %s30 = scalar_select %p29, 0, %s28
      %s31 = sadd.s32 1, %s22
      %s32 = scalar_select %p29, %s31, %s22
      %p33 = scmp.ge.s32.totalorder %s32, 2
      %s34 = scalar_select %p33, 0, %s32
      %s35 = ssub.s32 %s22, %s34
      %p36 = scmp.eq.s32.totalorder %s35, 0
      %s38 = sadd.s32 %s37, 1
      %s39 = scalar_select %p36, %s37, %s38
      %p42 = pneg %p36
      %p43 = scmp.eq.s32.totalorder %s15, 1
      %p44 = por %p42, %p43
      %p45 = scmp.ne.s32.totalorder %s37, %s40
      %p46 = scmp.eq.s32.totalorder %s15, 0
      %p47 = por %p45, %p46
      %p48 = scmp.ne.s32.totalorder %s37, %s40
      %p49 = scmp.eq.s32.totalorder %s20, 1
      %p50 = por %p48, %p49
      %p51 = scmp.ne.s32.totalorder %s40, %s41
      %p52 = scmp.eq.s32.totalorder %s20, 0
      %p53 = por %p51, %p52
      %p54 = scmp.ne.s32.totalorder %s40, %s41
      %p55 = scmp.eq.s32.totalorder %s21, 1
      %p56 = por %p54, %p55
      %p58 = scmp.ne.s32.totalorder %s41, %s57
      %p59 = scmp.eq.s32.totalorder %s21, 0
      %p60 = por %p58, %p59
      %s62 = sadd.s32 %s61, 1
      %p65 = scmp.eq.s32.totalorder %s15, 1
      %p66 = scmp.ne.s32.totalorder %s61, %s63
      %p67 = scmp.eq.s32.totalorder %s15, 0
      %p68 = por %p66, %p67
      %p69 = scmp.ne.s32.totalorder %s61, %s63
      %p70 = scmp.eq.s32.totalorder %s20, 1
      %p71 = por %p69, %p70
      %p72 = scmp.ne.s32.totalorder %s63, %s64
      %p73 = scmp.eq.s32.totalorder %s20, 0
      %p74 = por %p72, %p73
      %p75 = scmp.ne.s32.totalorder %s63, %s64
      %p76 = scmp.eq.s32.totalorder %s21, 1
      %p77 = por %p75, %p76
      %p79 = scmp.ne.s32.totalorder %s64, %s78
      %p80 = scmp.eq.s32.totalorder %s21, 0
      %p81 = por %p79, %p80
      %s82 = ssub.s32 %s23, %s30
      %p83 = scmp.eq.s32.totalorder %s82, 0
      %s85 = sadd.s32 %s84, 1
      %s86 = scalar_select %p83, %s84, %s85
      %p89 = pneg %p83
      %p90 = scmp.eq.s32.totalorder %s15, 1
      %p91 = por %p89, %p90
      %p92 = scmp.ne.s32.totalorder %s84, %s87
      %p93 = scmp.eq.s32.totalorder %s15, 0
      %p94 = por %p92, %p93
      %p95 = scmp.ne.s32.totalorder %s84, %s87
      %p96 = scmp.eq.s32.totalorder %s20, 1
      %p97 = por %p95, %p96
      %p98 = scmp.ne.s32.totalorder %s87, %s88
      %p99 = scmp.eq.s32.totalorder %s20, 0
      %p100 = por %p98, %p99
      %p101 = scmp.ne.s32.totalorder %s87, %s88
      %p102 = scmp.eq.s32.totalorder %s21, 1
      %p103 = por %p101, %p102
      %p105 = scmp.ne.s32.totalorder %s88, %s104
      %p106 = scmp.eq.s32.totalorder %s21, 0
      %p107 = por %p105, %p106
      %s108 = ssub.s32 %s22, %s34
      %s109 = ssub.s32 %s23, %s30
      %s110 = sor.u32 %s108, %s109
      %p111 = scmp.eq.s32.totalorder %s110, 0
      %s113 = sadd.s32 %s112, 1
      %s114 = scalar_select %p111, %s112, %s113
      %p117 = pneg %p111
      %p118 = scmp.eq.s32.totalorder %s15, 1
      %p119 = por %p117, %p118
      %p120 = scmp.ne.s32.totalorder %s112, %s115
      %p121 = scmp.eq.s32.totalorder %s15, 0
      %p122 = por %p120, %p121
      %p123 = scmp.ne.s32.totalorder %s112, %s115
      %p124 = scmp.eq.s32.totalorder %s20, 1
      %p125 = por %p123, %p124
      %p126 = scmp.ne.s32.totalorder %s115, %s116
      %p127 = scmp.eq.s32.totalorder %s20, 0
      %p128 = por %p126, %p127
      %p129 = scmp.ne.s32.totalorder %s115, %s116
      %p130 = scmp.eq.s32.totalorder %s21, 1
      %p131 = por %p129, %p130
      %p133 = scmp.ne.s32.totalorder %s116, %s132
      %p134 = scmp.eq.s32.totalorder %s21, 0
      %p135 = por %p133, %p134
      %p136 = scmp.le.s32.totalorder 1, %s15
      %p137 = scmp.lt.s32.totalorder %s15, 3
      %p138 = pnand %p136, %p137
      %p139 = pneg %p138
      // Predicated region
      $region9: #{tpu_custom_call.1} parent=5 // pred_check
        _
      $region10: #{tpu_custom_call.1} parent=5 // pred_check_branch
        %141 = sbr.rel (%p138) target = $region12
      $region11: #{tpu_custom_call.1} parent=5 // pred_region
        %s142 = ssub.s32 %s15, 1
        // Predicated region
        $region13: #{tpu_custom_call.1} parent=11 // pred_check
          %p143 = pneg %p74
        $region14: #{tpu_custom_call.1} parent=11 // pred_check_branch
          %145 = sbr.rel (%p143) target = $region16
        $region15: #{tpu_custom_call.1} parent=11 // pred_region
          _
        $region16: #{tpu_custom_call.1} parent=11 // pred_fallthru
          _
        // Predicated region
        $region17: #{tpu_custom_call.1} parent=11 // pred_check
          %p146 = pneg %p100
        $region18: #{tpu_custom_call.1} parent=11 // pred_check_branch
          %148 = sbr.rel (%p146) target = $region20
        $region19: #{tpu_custom_call.1} parent=11 // pred_region
          %p149 = scmp.lt.s32.totalorder %s25, 0
          %s150 = scalar_select %p149, %s25, 0
          %s151 = smul.addr %s150, 4
          %s152 = scalar_lea.vmem %s2, %s151
        $region20: #{tpu_custom_call.1} parent=11 // pred_fallthru
          _
      $region12: #{tpu_custom_call.1} parent=5 // pred_fallthru
        _
      %p153 = scmp.lt.s32.totalorder %s15, 2
      // Predicated region
      $region21: #{tpu_custom_call.1} parent=5 // pred_check
        %p154 = pneg %p153
      $region22: #{tpu_custom_call.1} parent=5 // pred_check_branch
        %156 = sbr.rel (%p154) target = $region24
      $region23: #{tpu_custom_call.1} parent=5 // pred_region
        // Predicated region
        $region25: #{tpu_custom_call.1} parent=23 // pred_check
          %p157 = pneg %p47
        $region26: #{tpu_custom_call.1} parent=23 // pred_check_branch
          %159 = sbr.rel (%p157) target = $region28
        $region27: #{tpu_custom_call.1} parent=23 // pred_region
          %s160 = sand.u32 %s37, 1
          %s161 = scalar_lea.sflag [#allocation3], %s160
          %s162 = sand.u32 %s37, 1
          %s163 = smul.addr %s162, 64
          %s164 = scalar_lea.vmem [#allocation2], %s163
          %s165 = smul.u32 4, %s22
          %s167 = ssub.s32 1024, 1024
          %168 = vsyncadd %s161, %s167
          %s169 = smul.addr %s165, 2
          %s170 = smul.addr %s169, 128
          %s171 = scalar_lea.hbm %s0, %s170
          %s172 = sshll.u32 %s164, 4
          %s173 = int_to_ptr.vmem [resolvable:$true] %s172
          %178 = dma.hbm_to_vmem [thread:$0]  %s171, 1024, %s173, %s161, 128, 128, 8
        $region28: #{tpu_custom_call.1} parent=23 // pred_fallthru
          _
      $region24: #{tpu_custom_call.1} parent=5 // pred_fallthru
        _
      %p179 = scmp.le.s32.totalorder 1, %s15
      %p180 = scmp.lt.s32.totalorder %s15, 3
      %p181 = pnand %p179, %p180
      %p182 = pneg %p181
      // Predicated region
      $region29: #{tpu_custom_call.1} parent=5 // pred_check
        _
      $region30: #{tpu_custom_call.1} parent=5 // pred_check_branch
        %184 = sbr.rel (%p181) target = $region32
      $region31: #{tpu_custom_call.1} parent=5 // pred_region
        %s185 = ssub.s32 %s15, 1
        %s186 = sand.u32 %s40, 1
        %s187 = scalar_lea.sflag [#allocation3], %s186
        %s188 = sand.u32 %s40, 1
        %s189 = smul.addr %s188, 64
        %s190 = scalar_lea.vmem [#allocation2], %s189
        // Predicated region
        $region33: #{tpu_custom_call.1} parent=31 // pred_check
          %p191 = pneg %p53
        $region34: #{tpu_custom_call.1} parent=31 // pred_check_branch
          %193 = sbr.rel (%p191) target = $region36
        $region35: #{tpu_custom_call.1} parent=31 // pred_region
          %194 = dma.done %s187, 1024
        $region36: #{tpu_custom_call.1} parent=31 // pred_fallthru
          _
        %s195 = sand.u32 %s40, 1
        %s196 = scalar_lea.sflag [#allocation3], %s195
        %s197 = sand.u32 %s40, 1
        %s198 = smul.addr %s197, 64
        %s199 = scalar_lea.vmem [#allocation2], %s198
        %p200 = pneg %p53
        %p201 = pneg %p50
        %p202 = pneg %p74
        %p203 = pneg %p71
        %p204 = scmp.lt.s32.totalorder %s25, 0
        %s205 = scalar_select %p204, %s25, 0
        %s206 = smul.addr %s205, 4
        %s207 = scalar_lea.vmem %s2, %s206
        %p208 = pneg %p100
        %p209 = pneg %p97
        %p210 = pneg %p128
        %p211 = pneg %p125
        %s212 = sand.u32 %s115, 1
        %s213 = scalar_lea.sflag [#allocation4], %s212
        %s214 = sand.u32 %s115, 1
        %s215 = smul.addr %s214, 128
        %s216 = scalar_lea.vmem [#allocation5], %s215
        %s217 = smul.u32 4, %s24
        %p218 = scmp.lt.s32.totalorder %s25, 0
        %s219 = scalar_select %p218, %s25, 0
        %s220 = smul.addr %s219, 4
        %s221 = scalar_lea.vmem %s2, %s220
        %s222 = smul.u32 4, %s24
        %v224 = vlaneseq
        %v225 = vshrl.u32 %v224, 7
        %v226 = vadd.s32 %v225, 8
        %v227 = vadd.s32 %v225, 16
        %v228 = vadd.s32 %v225, 24
        %v229 = vlaneseq
        %v230 = vand.u32 %v229, 127
        %s231 = smul.u32 %s25, 32
        %v232 = vstv %s231
        %v233 = vadd.s32 %v230, %v232
        %vm234 = vcmp.ge.s32.totalorder %v225, 24
        %vm235 = vcmp.ge.s32.totalorder %v226, 24
        %vm236 = vcmp.ge.s32.totalorder %v227, 24
        %vm237 = vcmp.ge.s32.totalorder %v228, 24
        %vm238 = vcmp.ge.s32.totalorder %v233, 24
        %vm239 = vmor %vm234, %vm238
        %vm240 = vmor %vm235, %vm238
        %vm241 = vmor %vm236, %vm238
        %vm242 = vmor %vm237, %vm238
        %v243 = vld [vmem:[%s1] sm:$0xf]
        %v244 = vld [vmem:[%s1 + $0x4] sm:$0xf]
        %v245 = vld [vmem:[%s1 + $0x8] sm:$0xf]
        %v246 = vld [vmem:[%s1 + $0xc] sm:$0xf]
        %v247 = vld [vmem:[%s221] sm:$0xf]
        %v248 = vld [vmem:[%s221 + $0x4] sm:$0xf]
        loop: start=0, step=1, limit=4
        $region37: #{tpu_custom_call.1} parent=31 // loop_pre_header
          _
        $region38: #{tpu_custom_call.1} parent=31 // loop_header
          %s250 = sphi 0, %s254
          %p251 = scmp.ge.s32.totalorder %s250, 4
        $region39: #{tpu_custom_call.1} parent=31 // loop_header_branch
          %253 = sbr.rel (%p251) target = $region43
        $region40: #{tpu_custom_call.1} parent=31 // loop_body
          %s255 = smul.u32 %s250, 16
          %s256 = scalar_lea.vmem %s190, %s255 [#allocation2]
          %v257 = vld [vmem:[%s256] sm:$0xff]
          %v258 = vld [vmem:[%s256 + $0x8] sm:$0xff]
          %v259 = vpack.c.bf16 %v258, %v257
          %v262 = vunpack.c.l.b16 %v247
          %v263 = vunpack.c.l.b16 %v248
          %v264 = vpack.c.b16 %v263, %v262
          %vm266 = vcmask 130048
          %v268 = vsel %vm266, %v259, 0
          %270 = vmatprep.subr.bf16.mxu0 0
          %271 = vmatpush1.bf16.msra.mxu0 %v264
          %272 = vmatprep.subr.bf16.mxu0 0
          %273 = vmatpush1.bf16.msra.mxu0 0
          %274 = vmatprep.subr.bf16.mxu0 0
          %275 = vmatpush1.bf16.msra.mxu0 0
          %276 = vmatprep.subr.bf16.mxu0 0
          %277 = vmatpush1.bf16.msra.mxu0 0
          %278 = vmatprep.subr.bf16.mxu0 0
          %279 = vmatpush1.bf16.msra.mxu0 0
          %280 = vmatprep.subr.bf16.mxu0 0
          %281 = vmatpush1.bf16.msra.mxu0 0
          %282 = vmatprep.subr.bf16.mxu0 0
          %283 = vmatpush1.bf16.msra.mxu0 0
          %284 = vmatprep.subr.bf16.mxu0 0
          %285 = vmatpush1.bf16.msra.mxu0 0
          %286 = vmatprep.subr.bf16.mxu0 0
          %287 = vmatpush1.bf16.msra.mxu0 0
          %288 = vmatprep.subr.bf16.mxu0 0
          %289 = vmatpush1.bf16.msra.mxu0 0
          %290 = vmatprep.subr.bf16.mxu0 0
          %291 = vmatpush1.bf16.msra.mxu0 0
          %292 = vmatprep.subr.bf16.mxu0 0
          %293 = vmatpush1.bf16.msra.mxu0 0
          %294 = vmatprep.subr.bf16.mxu0 0
          %295 = vmatpush1.bf16.msra.mxu0 0
          %296 = vmatprep.subr.bf16.mxu0 0
          %297 = vmatpush1.bf16.msra.mxu0 0
          %298 = vmatprep.subr.bf16.mxu0 0
          %299 = vmatpush1.bf16.msra.mxu0 0
          %300 = vmatprep.subr.bf16.mxu0 0
          %301 = vmatpush1.bf16.msra.mxu0 0
          %302 = vmatprep.mubr.bf16.mxu0 0
          %303 = vmatmul.mubr.bf16.gmra.mrb[0].mxu0 %v268
          %v304 = vpop.f32.mrb[0].mxu0
          %v305 = vadd.f32 0.0, %v304
          %v306 = vpop.f32.mrb[0].mxu0
          %v307 = vpop.f32.mrb[0].mxu0
          %v308 = vadd.f32 0.0, %v307
          %v309 = vpop.f32.mrb[0].mxu0
          %310 = vdwg.mxu0
          %v311 = vpack.c.bf16 %v308, %v305
          %v316 = vunpack.c.l.b16 %v243
          %v317 = vunpack.c.l.b16 %v244
          %v318 = vunpack.c.l.b16 %v245
          %v319 = vunpack.c.l.b16 %v246
          %v320 = vpack.c.b16 %v317, %v316
          %v321 = vpack.c.b16 %v319, %v318
          %v323 = vsel %vm266, %v320, 0
          %v326 = vsel %vm266, %v321, 0
          %328 = vmatprep.subr.bf16.mxu0 0
          %329 = vmatpush1.bf16.msra.mxu0 %v311
          %330 = vmatprep.subr.bf16.mxu0 0
          %331 = vmatpush1.bf16.msra.mxu0 0
          %332 = vmatprep.subr.bf16.mxu0 0
          %333 = vmatpush1.bf16.msra.mxu0 0
          %334 = vmatprep.subr.bf16.mxu0 0
          %335 = vmatpush1.bf16.msra.mxu0 0
          %336 = vmatprep.subr.bf16.mxu0 0
          %337 = vmatpush1.bf16.msra.mxu0 0
          %338 = vmatprep.subr.bf16.mxu0 0
          %339 = vmatpush1.bf16.msra.mxu0 0
          %340 = vmatprep.subr.bf16.mxu0 0
          %341 = vmatpush1.bf16.msra.mxu0 0
          %342 = vmatprep.subr.bf16.mxu0 0
          %343 = vmatpush1.bf16.msra.mxu0 0
          %344 = vmatprep.subr.bf16.mxu0 0
          %345 = vmatpush1.bf16.msra.mxu0 0
          %346 = vmatprep.subr.bf16.mxu0 0
          %347 = vmatpush1.bf16.msra.mxu0 0
          %348 = vmatprep.subr.bf16.mxu0 0
          %349 = vmatpush1.bf16.msra.mxu0 0
          %350 = vmatprep.subr.bf16.mxu0 0
          %351 = vmatpush1.bf16.msra.mxu0 0
          %352 = vmatprep.subr.bf16.mxu0 0
          %353 = vmatpush1.bf16.msra.mxu0 0
          %354 = vmatprep.subr.bf16.mxu0 0
          %355 = vmatpush1.bf16.msra.mxu0 0
          %356 = vmatprep.subr.bf16.mxu0 0
          %357 = vmatpush1.bf16.msra.mxu0 0
          %358 = vmatprep.subr.bf16.mxu0 0
          %359 = vmatpush1.bf16.msra.mxu0 0
          %360 = vmatprep.mubr.bf16.mxu0 0
          %361 = vmatmul.mubr.bf16.gmra.mrb[0].mxu0 %v323
          %v362 = vpop.f32.mrb[0].mxu0
          %v363 = vadd.f32 0.0, %v362
          %v364 = vpop.f32.mrb[0].mxu0
          %v365 = vpop.f32.mrb[0].mxu0
          %v366 = vadd.f32 0.0, %v365
          %v367 = vpop.f32.mrb[0].mxu0
          %368 = vmatprep.mubr.bf16.mxu0 0
          %369 = vmatmul.mubr.bf16.gmra.mrb[0].mxu0 %v326
          %v370 = vpop.f32.mrb[0].mxu0
          %v371 = vadd.f32 0.0, %v370
          %v372 = vpop.f32.mrb[0].mxu0
          %v373 = vpop.f32.mrb[0].mxu0
          %v374 = vadd.f32 0.0, %v373
          %v375 = vpop.f32.mrb[0].mxu0
          %376 = vdwg.mxu0
          %v377 = vsel %vm239, 0.5, %v363
          %v378 = vsel %vm240, 0.5, %v366
          %v379 = vsel %vm241, 0.5, %v371
          %v380 = vsel %vm242, 0.5, %v374
          %s381 = smul.u32 %s250, 32
          %s382 = scalar_lea.vmem %s216, %s381 [#allocation5]
          %vm383 = vcmask 261120
          %384 = vst.msk [vmem:[%s382] sm:$0xff] %vm383, %v377
          %385 = vst.msk [vmem:[%s382 + $0x8] sm:$0xff] %vm383, %v378
          %386 = vst.msk [vmem:[%s382 + $0x10] sm:$0xff] %vm383, %v379
          %387 = vst.msk [vmem:[%s382 + $0x18] sm:$0xff] %vm383, %v380
        $region41: #{tpu_custom_call.1} parent=31 // loop_footer
          %s254 = sadd.s32 1, %s250
        $region42: #{tpu_custom_call.1} parent=31 // loop_footer_branch
          %249 = sbr.rel target = $region38
        $region43: #{tpu_custom_call.1} parent=31 // loop_exit
          _
        %s388 = sand.u32 %s115, 1
        %s389 = scalar_lea.sflag [#allocation4], %s388
        %s390 = sand.u32 %s115, 1
        %s391 = smul.addr %s390, 128
        %s392 = scalar_lea.vmem [#allocation5], %s391
        // Predicated region
        $region44: #{tpu_custom_call.1} parent=31 // pred_check
          %p393 = pneg %p125
        $region45: #{tpu_custom_call.1} parent=31 // pred_check_branch
          %395 = sbr.rel (%p393) target = $region47
        $region46: #{tpu_custom_call.1} parent=31 // pred_region
          %s396 = smul.u32 4, %s24
          %s398 = ssub.s32 2048, 2048
          %399 = vsyncadd %s389, %s398
          %s400 = smul.addr %s396, 4
          %s401 = sadd.s32 %s25, %s400
          %s402 = smul.addr %s401, 128
          %s403 = scalar_lea.hbm %s3, %s402
          %s404 = sshll.u32 %s392, 4
          %s405 = int_to_ptr.vmem [resolvable:$true] %s404
          %410 = dma.vmem_to_hbm [thread:$0]  %s405, 2048, %s403, %s389, 128, 128, 8
        $region47: #{tpu_custom_call.1} parent=31 // pred_fallthru
          _
      $region32: #{tpu_custom_call.1} parent=5 // pred_fallthru
        _
      %p411 = scmp.le.s32.totalorder 2, %s15
      // Predicated region
      $region48: #{tpu_custom_call.1} parent=5 // pred_check
        %p412 = pneg %p411
      $region49: #{tpu_custom_call.1} parent=5 // pred_check_branch
        %414 = sbr.rel (%p412) target = $region51
      $region50: #{tpu_custom_call.1} parent=5 // pred_region
        %s415 = ssub.s32 %s15, 2
        // Predicated region
        $region52: #{tpu_custom_call.1} parent=50 // pred_check
          %p416 = pneg %p131
        $region53: #{tpu_custom_call.1} parent=50 // pred_check_branch
          %418 = sbr.rel (%p416) target = $region55
        $region54: #{tpu_custom_call.1} parent=50 // pred_region
          %s419 = sand.u32 %s116, 1
          %s420 = scalar_lea.sflag [#allocation4], %s419
          %s421 = sand.u32 %s116, 1
          %s422 = smul.addr %s421, 128
          %s423 = scalar_lea.vmem [#allocation5], %s422
          %424 = dma.done %s420, 2048
        $region55: #{tpu_custom_call.1} parent=50 // pred_fallthru
          _
      $region51: #{tpu_custom_call.1} parent=5 // pred_fallthru
        _
    $region6: #{tpu_custom_call.1} parent=1 // loop_footer
      %s19 = sadd.s32 1, %s15
    $region7: #{tpu_custom_call.1} parent=1 // loop_footer_branch
      %14 = sbr.rel target = $region3
    $region8: #{tpu_custom_call.1} parent=1 // loop_exit
      _
    %425 = vsyncpa [#allocation3], 1
    %s426 = scalar_lea.sflag [#allocation3], 1
    %427 = vsyncpa %s426, 1
    %428 = vsyncpa [#allocation4], 1
    %s429 = scalar_lea.sflag [#allocation4], 1
    %430 = vsyncpa %s429, 1

</llo_original>
